<compile_context>
chip_gen: v6e
topology: v6e:2x2x1
jax: 0.10.0
libtpu: 0.0.40
codegen_flags: <defaults>
</compile_context>

<pallas_src>
import jax
import jax.numpy as jnp
from jax import lax
from jax.experimental import pallas as pl
from jax.experimental.pallas import tpu as pltpu

N_HOSTS = 16
N_FEATS = 3 * N_HOSTS                              # 48
N_WINDOW = 1
N_LATENT = N_FEATS                                 # 48
N_HIDDEN = 32
N_S = N_HOSTS * N_HOSTS                            # 256
N_IN = N_WINDOW * N_FEATS + N_S                    # 304

# nn.LeakyReLU(True) -> negative_slope == 1.0 (identity). Fusion requires this.
NEGATIVE_SLOPE = 1.0


def _leaky_relu(x, negative_slope):
    return jnp.where(x >= 0, x, negative_slope * x)


# --------------------------------------------------------------------------- #
# Host-side (done once): fold identity activations -> single affine map.
# --------------------------------------------------------------------------- #
def fuse_params(params):
    """Collapse Linear->Id->Linear->Id->Linear into fused weight rows + bias."""
    assert NEGATIVE_SLOPE == 1.0, "layer fusion requires identity LeakyReLU"
    w1t, b1, w2t, b2, w3t, b3 = params
    wf = w1t @ w2t @ w3t                       # (304, 1)
    bf = b1 @ w2t @ w3t + b2 @ w3t + b3        # (1, 1) scalar bias
    # Split the fused column to match the un-concatenated inputs and store as
    # lane-dense rows (no (N,1) lane-padding blow-up in VMEM).
    wf_t_row = wf[:N_FEATS].reshape(1, N_FEATS)        # (1, 48)
    wf_s_row = wf[N_FEATS:].reshape(1, N_S)            # (1, 256) == s.view(-1)
    return (wf_t_row.astype(jnp.float32),
            wf_s_row.astype(jnp.float32),
            bf.astype(jnp.float32).reshape(1, 1))


# --------------------------------------------------------------------------- #
# Kernel
# --------------------------------------------------------------------------- #
def _fused_kernel(t_ref, s_ref, wt_ref, ws_ref, b_ref, o_ref):
    # t_ref: (tile_b, 48), s_ref: (tile_b, 256)   -- producer dtype
    # wt_ref: (1, 48), ws_ref: (1, 256)           -- fused weight rows (VMEM-resident)
    # b_ref:  (1, 1)                              -- fused bias (SMEM scalar)
    # o_ref:  (1, tile_b) f32                     -- lane-dense scores
    dn = (((1,), (1,)), ((), ()))   # contract feature axis of both: w @ x^T (MXU)
    z = lax.dot_general(wt_ref[...], t_ref[...], dn,
                        preferred_element_type=jnp.float32)
    z = z + lax.dot_general(ws_ref[...], s_ref[...], dn,
                            preferred_element_type=jnp.float32)
    o_ref[...] = jax.nn.sigmoid(z + b_ref[0, 0])


# --------------------------------------------------------------------------- #
# Wrappers
# --------------------------------------------------------------------------- #
def dragon_score_batched(t, s, fused_params, *, tile_b=2048, vmem_limit_bytes=None):
    """Batched DRAGON scores.

    t: (B, n_window, 48) or (B, 48); s: (B, 16, 16) or (B, 256).
    Inputs are consumed in their own dtype (bf16 halves HBM traffic);
    accumulation is f32.  Returns f32 scores of shape (B,).
    Ragged batches are padded to the tile; no divisibility requirement.
    """
    assert tile_b % 8 == 0, "row tile must be a multiple of 8 sublanes"
    wf_t_row, wf_s_row, bf = fused_params
    B = t.shape[0]
    t2 = t.reshape(B, N_FEATS)
    s2 = s.reshape(B, N_S)
    in_dtype = t2.dtype
    s2 = s2.astype(in_dtype)
    wt = wf_t_row.astype(in_dtype)
    ws = wf_s_row.astype(in_dtype)
    bias = bf.astype(jnp.float32).reshape(1, 1)

    num_tiles = int(pl.cdiv(B, tile_b))
    b_pad = num_tiles * tile_b
    if b_pad != B:
        t2 = jnp.pad(t2, ((0, b_pad - B), (0, 0)))
        s2 = jnp.pad(s2, ((0, b_pad - B), (0, 0)))

    itemsize = jnp.dtype(in_dtype).itemsize
    out = pl.pallas_call(
        _fused_kernel,
        out_shape=jax.ShapeDtypeStruct((num_tiles, tile_b), jnp.float32),
        grid=(num_tiles,),
        in_specs=[
            pl.BlockSpec((tile_b, N_FEATS), lambda i: (i, 0)),
            pl.BlockSpec((tile_b, N_S), lambda i: (i, 0)),
            pl.BlockSpec((1, N_FEATS), lambda i: (0, 0)),            # resident
            pl.BlockSpec((1, N_S), lambda i: (0, 0)),                # resident
            pl.BlockSpec(memory_space=pltpu.MemorySpace.SMEM),       # scalar bias
        ],
        out_specs=pl.BlockSpec((1, tile_b), lambda i: (i, 0)),       # lane-dense
        compiler_params=pltpu.CompilerParams(
            dimension_semantics=("parallel",),
            vmem_limit_bytes=vmem_limit_bytes,
        ),
        cost_estimate=pl.CostEstimate(
            flops=2 * b_pad * N_IN + 2 * b_pad,
            transcendentals=b_pad,
            bytes_accessed=(b_pad * N_IN * itemsize + 4 * b_pad
                            + N_IN * itemsize + 4),
        ),
    )(t2, s2, wt, ws, bias)
    return out.reshape(b_pad)[:B]


def dragon_forward(t, s, fused_params):
    """Equivalent of DRAGON_framework_16.forward(t, s) -> shape (1,) score.

    Single samples are routed through the batched kernel with a tiny 8-row
    tile (per-sample launch overhead dominates; a dedicated kernel buys nothing).
    """
    return dragon_score_batched(t.reshape(1, N_FEATS), s.reshape(1, N_S),
                                fused_params, tile_b=8)


# --------------------------------------------------------------------------- #
# Reference (unfused, layered) implementation + param init for validation.
# --------------------------------------------------------------------------- #
def _reference_forward(t, s, params):
    w1t, b1, w2t, b2, w3t, b3 = params
    x = jnp.concatenate([t.reshape(-1), s.reshape(-1)]).reshape(1, N_IN)
    h1 = _leaky_relu(x @ w1t + b1, NEGATIVE_SLOPE)
    h2 = _leaky_relu(h1 @ w2t + b2, NEGATIVE_SLOPE)
    h3 = h2 @ w3t + b3
    return jax.nn.sigmoid(h3).reshape(-1)


def _init_params(key):
    """PyTorch-style uniform(-1/sqrt(fan_in), 1/sqrt(fan_in)) init (deterministic)."""
    keys = jax.random.split(key, 6)

    def uinit(k, shape, fan_in):
        bound = 1.0 / float(fan_in) ** 0.5
        return jax.random.uniform(k, shape, jnp.float32, -bound, bound)

    w1t = uinit(keys[0], (N_IN, N_LATENT), N_IN)            # Linear(304, 48) W^T
    b1 = uinit(keys[1], (1, N_LATENT), N_IN)
    w2t = uinit(keys[2], (N_LATENT, N_HIDDEN), N_LATENT)    # Linear(48, 32) W^T
    b2 = uinit(keys[3], (1, N_HIDDEN), N_LATENT)
    w3t = uinit(keys[4], (N_HIDDEN, 1), N_HIDDEN)           # Linear(32, 1) W^T
    b3 = uinit(keys[5], (1, 1), N_HIDDEN)
    return (w1t, b1, w2t, b2, w3t, b3)


if __name__ == "__main__":
    key = jax.random.PRNGKey(0)
    k_t, k_s, k_p, k_b = jax.random.split(key, 4)

    # t: window of per-host features (1, 48); s: host-to-host matrix (16, 16)
    t = jax.random.normal(k_t, (N_WINDOW, N_FEATS), jnp.float32)
    s = jax.random.normal(k_s, (N_HOSTS, N_HOSTS), jnp.float32)

    params = _init_params(k_p)
    fused = fuse_params(params)       # done once, outside the kernel

    # ---- single sample (matches the PyTorch forward exactly) ----
    score = dragon_forward(t, s, fused)
    jax.block_until_ready(score)
    ref = _reference_forward(t, s, params)
    assert score.shape == (1,)
    assert jnp.allclose(score, ref, atol=2e-3, rtol=2e-3), (score, ref)

    # ---- batched path: ragged batch (B % tile_b != 0), multi-step grid ----
    B = 300
    tb = jax.random.normal(k_b, (B, N_WINDOW, N_FEATS), jnp.float32)
    sb = jax.random.normal(jax.random.fold_in(k_b, 1),
                           (B, N_HOSTS, N_HOSTS), jnp.float32)
    scores = dragon_score_batched(tb, sb, fused, tile_b=128)
    jax.block_until_ready(scores)
    ref_b = jax.vmap(lambda tt, ss: _reference_forward(tt, ss, params))(tb, sb)
    assert scores.shape == (B,)
    assert jnp.allclose(scores, ref_b.reshape(B), atol=2e-3, rtol=2e-3)

    # ---- bf16 input path (halves HBM read traffic); compare against a
    # reference computed on the same bf16-rounded inputs/weights ----
    tb16 = tb.astype(jnp.bfloat16)
    sb16 = sb.astype(jnp.bfloat16)
    scores16 = dragon_score_batched(tb16, sb16, fused, tile_b=128)
    jax.block_until_ready(scores16)
    wf_t_row, wf_s_row, bf = fused
    z16 = (tb16.reshape(B, N_FEATS).astype(jnp.float32)
           @ wf_t_row.astype(jnp.bfloat16).astype(jnp.float32).T
           + sb16.reshape(B, N_S).astype(jnp.float32)
           @ wf_s_row.astype(jnp.bfloat16).astype(jnp.float32).T
           + bf)
    ref16 = jax.nn.sigmoid(z16).reshape(B)
    assert scores16.shape == (B,)
    assert jnp.allclose(scores16, ref16, atol=2e-3, rtol=2e-3)

    print("KERNEL_OK")
</pallas_src>

<mosaic_0001>
module attributes {stable_mosaic.version = 11 : i64} {
  func.func @_fused_kernel(%arg0: i32, %arg1: memref<8x48xf32, #tpu.memory_space<vmem>>, %arg2: memref<8x256xf32, #tpu.memory_space<vmem>>, %arg3: memref<1x48xf32, #tpu.memory_space<vmem>>, %arg4: memref<1x256xf32, #tpu.memory_space<vmem>>, %arg5: memref<1x1xf32, #tpu.memory_space<smem>>, %arg6: memref<1x8xf32, #tpu.memory_space<vmem>>) attributes {dimension_semantics = [#tpu.dimension_semantics<parallel>], iteration_bounds = array<i64: 1>, scalar_prefetch = 0 : i64, scratch_operands = 0 : i64, tpu.core_type = #tpu.core_type<tc>, window_params = [{transform_indices = @transform_0, window_bounds = array<i64: 8, 48>}, {transform_indices = @transform_1, window_bounds = array<i64: 8, 256>}, {pipeline_mode = #tpu.pipeline_mode<synchronous>, transform_indices = @transform_2, window_bounds = array<i64: 1, 48>}, {pipeline_mode = #tpu.pipeline_mode<synchronous>, transform_indices = @transform_3, window_bounds = array<i64: 1, 256>}, {transform_indices = @transform_4, window_bounds = array<i64: 1, 1>}, {transform_indices = @transform_5, window_bounds = array<i64: 1, 8>}]} {
    %c0 = arith.constant 0 : index
    %c0_0 = arith.constant 0 : index
    %0 = vector.load %arg3[%c0, %c0_0] : memref<1x48xf32, #tpu.memory_space<vmem>>, vector<1x48xf32>
    %c0_1 = arith.constant 0 : index
    %c0_2 = arith.constant 0 : index
    %1 = vector.load %arg1[%c0_1, %c0_2] : memref<8x48xf32, #tpu.memory_space<vmem>>, vector<8x48xf32>
    %cst = arith.constant dense<0.000000e+00> : vector<1x8xf32>
    %2 = tpu.matmul %0, %1, %cst {dimension_numbers = #tpu.dot_dimension_numbers<[1], [1], [0], [0], [0, 0, 1, 0], [], []>} : vector<1x48xf32>, vector<8x48xf32>, vector<1x8xf32> -> vector<1x8xf32>
    %c0_3 = arith.constant 0 : index
    %c0_4 = arith.constant 0 : index
    %3 = vector.load %arg4[%c0_3, %c0_4] : memref<1x256xf32, #tpu.memory_space<vmem>>, vector<1x256xf32>
    %c0_5 = arith.constant 0 : index
    %c0_6 = arith.constant 0 : index
    %4 = vector.load %arg2[%c0_5, %c0_6] : memref<8x256xf32, #tpu.memory_space<vmem>>, vector<8x256xf32>
    %cst_7 = arith.constant dense<0.000000e+00> : vector<1x8xf32>
    %5 = tpu.matmul %3, %4, %cst_7 {dimension_numbers = #tpu.dot_dimension_numbers<[1], [1], [0], [0], [0, 0, 1, 0], [], []>} : vector<1x256xf32>, vector<8x256xf32>, vector<1x8xf32> -> vector<1x8xf32>
    %6 = arith.addf %2, %5 : vector<1x8xf32>
    %c0_8 = arith.constant 0 : index
    %c0_9 = arith.constant 0 : index
    %7 = memref.load %arg5[%c0_8, %c0_9] : memref<1x1xf32, #tpu.memory_space<smem>>
    %8 = vector.broadcast %7 : f32 to vector<1x8xf32>
    %9 = arith.addf %6, %8 : vector<1x8xf32>
    %10 = arith.negf %9 : vector<1x8xf32>
    %11 = math.exp %10 : vector<1x8xf32>
    %cst_10 = arith.constant 1.000000e+00 : f32
    %12 = vector.broadcast %cst_10 : f32 to vector<1x8xf32>
    %13 = arith.addf %12, %11 : vector<1x8xf32>
    %14 = arith.divf %12, %13 : vector<1x8xf32>
    %c0_11 = arith.constant 0 : index
    %c0_12 = arith.constant 0 : index
    %15 = vector.load %arg6[%c0_11, %c0_12] : memref<1x8xf32, #tpu.memory_space<vmem>>, vector<1x8xf32>
    tpu.vector_store %arg6[%c0_11, %c0_12], %14 {strides = array<i32>} : memref<1x8xf32, #tpu.memory_space<vmem>>, vector<1x8xf32>,
    return
  }
  func.func @transform_0(%arg0: i32) -> (i32, i32) {
    %c0_i32 = arith.constant 0 : i32
    %c0_i32_0 = arith.constant 0 : i32
    return %arg0, %c0_i32 : i32, i32
  }
  func.func @transform_1(%arg0: i32) -> (i32, i32) {
    %c0_i32 = arith.constant 0 : i32
    %c0_i32_0 = arith.constant 0 : i32
    return %arg0, %c0_i32 : i32, i32
  }
  func.func @transform_2(%arg0: i32) -> (i32, i32) {
    %c0_i32 = arith.constant 0 : i32
    %c0_i32_0 = arith.constant 0 : i32
    %c0_i32_1 = arith.constant 0 : i32
    return %c0_i32, %c0_i32_0 : i32, i32
  }
  func.func @transform_3(%arg0: i32) -> (i32, i32) {
    %c0_i32 = arith.constant 0 : i32
    %c0_i32_0 = arith.constant 0 : i32
    %c0_i32_1 = arith.constant 0 : i32
    return %c0_i32, %c0_i32_0 : i32, i32
  }
  func.func @transform_4(%arg0: i32) -> (i32, i32) {
    %c0_i32 = arith.constant 0 : i32
    %c0_i32_0 = arith.constant 0 : i32
    %c0_i32_1 = arith.constant 0 : i32
    return %c0_i32, %c0_i32_0 : i32, i32
  }
  func.func @transform_5(%arg0: i32) -> (i32, i32) {
    %c0_i32 = arith.constant 0 : i32
    %c0_i32_0 = arith.constant 0 : i32
    return %arg0, %c0_i32 : i32, i32
  }
}

</mosaic_0001>

<llo_original>
// kernel: tpu_custom_call.1
$region0: #{tpu_custom_call.1}
  #allocation0 [shape = 'u32[]', space=smem, size = 0x4, offset = 0x4, fixed_abs, tag = 'smem constant byte address 0x4 - core index']
  #allocation1 [shape = 'u32[144,128]{1,0:T(1,128)}', space=vmem, size = 0x12000, scoped, tag = 'internal scratch']
  #allocation2 [shape = 'f32[1,1]{1,0:T(1,128)S(6)}', space=smem, size = 0x200, scoped, tag = 'scoped memory for tpu_custom_call.1']
  %s0 = inlined_call_operand.hbm [shape: f32[8,48], index: 0, kind: input, shape index: {}]
  %s1 = inlined_call_operand.hbm [shape: f32[8,256], index: 1, kind: input, shape index: {}]
  %s2 = inlined_call_operand.vmem [shape: f32[1,48], index: 2, kind: input, shape index: {}]
  %s3 = inlined_call_operand.vmem [shape: f32[1,256], index: 3, kind: input, shape index: {}]
  %s4 = inlined_call_operand.<no memory space> [shape: f32[1,1], index: 4, kind: input, shape index: {}]
  %s5 = inlined_call_operand.hbm [shape: f32[1,8], index: 5, kind: output, shape index: {}]
  %s6 = sld [smem:[#allocation0]]
  $region38: #{tpu_custom_call.1} parent=0
    _
  %s8 = ssub.s32 1, %s6
  %s9 = scalar_select 0, %s8, %s6
  %10 = sst [smem:[#allocation2]] %s4
  $region1: #{tpu_custom_call.1} parent=0
    #allocation3 [shape = 'u8[4096]{0}', space=vmem, size = 0x1000, scoped, tag = 'input window, operand 0, single buffered']
    #allocation4 [shape = 's32[1]{0}', space=sflag, size = 0x4, scoped, tag = 'scoped memory for tpu_custom_call.1']
    #allocation5 [shape = 's32[1]{0}', space=sflag, size = 0x4, scoped, tag = 'scoped memory for tpu_custom_call.1']
    #allocation6 [shape = 'u8[8192]{0}', space=vmem, size = 0x2000, scoped, tag = 'input window, operand 1, single buffered']
    #allocation7 [shape = 's32[1]{0}', space=sflag, size = 0x4, scoped, tag = 'scoped memory for tpu_custom_call.1']
    #allocation8 [shape = 'u8[512]{0}', space=vmem, size = 0x400, scoped, tag = 'output window, operand 0, single buffered']
    %11 = vsyncpa [#allocation4], 0
    %12 = vsyncpa [#allocation7], 0
    %13 = vsyncpa [#allocation5], 0
    // Predicated region
    $region2: #{tpu_custom_call.1} parent=1 // pred_check
      _
    $region3: #{tpu_custom_call.1} parent=1 // pred_check_branch
      %15 = sbr.rel (0) target = $region5
    $region4: #{tpu_custom_call.1} parent=1 // pred_region
      %s17 = ssub.s32 128, 128
      %18 = vsyncadd [#allocation4], %s17
      %s20 = sshll.u32 [#allocation3], 4
      %s21 = int_to_ptr.vmem [resolvable:$true] %s20
      %23 = dma.hbm_to_vmem [thread:$0]  %s0, 128, %s21, [#allocation4]
    $region5: #{tpu_custom_call.1} parent=1 // pred_fallthru
      _
    // Predicated region
    $region6: #{tpu_custom_call.1} parent=1 // pred_check
      _
    $region7: #{tpu_custom_call.1} parent=1 // pred_check_branch
      %25 = sbr.rel (0) target = $region9
    $region8: #{tpu_custom_call.1} parent=1 // pred_region
      %s27 = ssub.s32 256, 256
      %28 = vsyncadd [#allocation7], %s27
      %s30 = sshll.u32 [#allocation6], 4
      %s31 = int_to_ptr.vmem [resolvable:$true] %s30
      %33 = dma.hbm_to_vmem [thread:$0]  %s1, 256, %s31, [#allocation7]
    $region9: #{tpu_custom_call.1} parent=1 // pred_fallthru
      _
    // Predicated region
    $region10: #{tpu_custom_call.1} parent=1 // pred_check
      _
    $region11: #{tpu_custom_call.1} parent=1 // pred_check_branch
      %35 = sbr.rel (0) target = $region13
    $region12: #{tpu_custom_call.1} parent=1 // pred_region
      _
    $region13: #{tpu_custom_call.1} parent=1 // pred_fallthru
      _
    // Predicated region
    $region14: #{tpu_custom_call.1} parent=1 // pred_check
      _
    $region15: #{tpu_custom_call.1} parent=1 // pred_check_branch
      %37 = sbr.rel (0) target = $region17
    $region16: #{tpu_custom_call.1} parent=1 // pred_region
      _
    $region17: #{tpu_custom_call.1} parent=1 // pred_fallthru
      _
    // Predicated region
    $region18: #{tpu_custom_call.1} parent=1 // pred_check
      _
    $region19: #{tpu_custom_call.1} parent=1 // pred_check_branch
      %39 = sbr.rel (0) target = $region21
    $region20: #{tpu_custom_call.1} parent=1 // pred_region
      _
    $region21: #{tpu_custom_call.1} parent=1 // pred_fallthru
      _
    // Predicated region
    $region22: #{tpu_custom_call.1} parent=1 // pred_check
      _
    $region23: #{tpu_custom_call.1} parent=1 // pred_check_branch
      %41 = sbr.rel (0) target = $region25
    $region24: #{tpu_custom_call.1} parent=1 // pred_region
      %42 = dma.done [#allocation4], 128
    $region25: #{tpu_custom_call.1} parent=1 // pred_fallthru
      _
    // Predicated region
    $region26: #{tpu_custom_call.1} parent=1 // pred_check
      _
    $region27: #{tpu_custom_call.1} parent=1 // pred_check_branch
      %44 = sbr.rel (0) target = $region29
    $region28: #{tpu_custom_call.1} parent=1 // pred_region
      %45 = dma.done [#allocation7], 256
    $region29: #{tpu_custom_call.1} parent=1 // pred_fallthru
      _
    %v46 = vld [vmem:[%s2] sm:$0x1]
    %v47 = vld [vmem:[#allocation3] sm:$0xff]
    %v48 = vld [vmem:[%s3] sm:$0x3]
    %v49 = vld [vmem:[#allocation6] sm:$0xff]
    %v50 = vld [vmem:[#allocation6 + $0x8] sm:$0xff]
    %v52 = vlaneseq
    %v53 = vshrl.u32 %v52, 7
    %v54 = vsub.s32 0, %v53
    %v55 = vrot.slane %v48, %v54
    %v56 = vlaneseq
    %v57 = vshrl.u32 %v56, 7
    %v58 = vsub.s32 1, %v57
    %v59 = vrot.slane %v48, %v58
    %62 = vmatprep.subr.mxu0 0.0
    %63 = vmatpush1.xpose.msra.mxu0 0.0
    %64 = vmatprep.subr.mxu0 0.0
    %65 = vmatpush1.xpose.msra.mxu0 0.0
    %66 = vmatprep.subr.mxu0 0.0
    %67 = vmatpush1.xpose.msra.mxu0 0.0
    %68 = vmatprep.subr.mxu0 0.0
    %69 = vmatpush1.xpose.msra.mxu0 0.0
    %70 = vmatprep.subr.mxu0 0.0
    %71 = vmatpush1.xpose.msra.mxu0 0.0
    %72 = vmatprep.subr.mxu0 0.0
    %73 = vmatpush1.xpose.msra.mxu0 0.0
    %74 = vmatprep.subr.mxu0 0.0
    %75 = vmatpush1.xpose.msra.mxu0 0.0
    %76 = vmatprep.subr.mxu0 0.0
    %77 = vmatpush1.xpose.msra.mxu0 0.0
    %78 = vmatprep.subr.mxu0 0.0
    %79 = vmatpush1.xpose.msra.mxu0 0.0
    %80 = vmatprep.subr.mxu0 0.0
    %81 = vmatpush1.xpose.msra.mxu0 0.0
    %82 = vmatprep.subr.mxu0 0.0
    %83 = vmatpush1.xpose.msra.mxu0 0.0
    %84 = vmatprep.subr.mxu0 0.0
    %85 = vmatpush1.xpose.msra.mxu0 0.0
    %86 = vmatprep.subr.mxu0 0.0
    %87 = vmatpush1.xpose.msra.mxu0 0.0
    %88 = vmatprep.subr.mxu0 0.0
    %89 = vmatpush1.xpose.msra.mxu0 0.0
    %90 = vmatprep.subr.mxu0 0.0
    %91 = vmatpush1.xpose.msra.mxu0 0.0
    %92 = vmatprep.subr.mxu0 %v50
    %93 = vmatpush1.xpose.msra.mxu0 %v49
    %94 = vmatprep.subr.mxu0 0.0
    %95 = vmatpush2.xpose.msra.mxu0 0.0
    %96 = vmatprep.subr.mxu0 0.0
    %97 = vmatpush2.xpose.msra.mxu0 0.0
    %98 = vmatprep.subr.mxu0 0.0
    %99 = vmatpush2.xpose.msra.mxu0 0.0
    %100 = vmatprep.subr.mxu0 0.0
    %101 = vmatpush2.xpose.msra.mxu0 0.0
    %102 = vmatprep.subr.mxu0 0.0
    %103 = vmatpush2.xpose.msra.mxu0 0.0
    %104 = vmatprep.subr.mxu0 0.0
    %105 = vmatpush2.xpose.msra.mxu0 0.0
    %106 = vmatprep.subr.mxu0 0.0
    %107 = vmatpush2.xpose.msra.mxu0 0.0
    %108 = vmatprep.subr.mxu0 0.0
    %109 = vmatpush2.xpose.msra.mxu0 0.0
    %110 = vmatprep.subr.mxu0 0.0
    %111 = vmatpush2.xpose.msra.mxu0 0.0
    %112 = vmatprep.subr.mxu0 0.0
    %113 = vmatpush2.xpose.msra.mxu0 0.0
    %114 = vmatprep.subr.mxu0 0.0
    %115 = vmatpush2.xpose.msra.mxu0 0.0
    %116 = vmatprep.subr.mxu0 0.0
    %117 = vmatpush2.xpose.msra.mxu0 0.0
    %118 = vmatprep.subr.mxu0 0.0
    %119 = vmatpush2.xpose.msra.mxu0 0.0
    %120 = vmatprep.subr.mxu0 0.0
    %121 = vmatpush2.xpose.msra.mxu0 0.0
    %122 = vmatprep.subr.mxu0 0.0
    %123 = vmatpush2.xpose.msra.mxu0 0.0
    %124 = vmatprep.subr.mxu0 0.0
    %125 = vmatpush2.xpose.msra.mxu0 0.0
    %126 = vmatprep.mubr.f32.mxu0 %v59
    %127 = vmatmul.mubr.f32.gmra.mxu0 %v55
    %v128 = vpop.f32.mrf.mxu0
    %v129 = vadd.f32 0.0, %v128
    %v130 = vpop.f32.mrf.mxu0
    %131 = vdwg.mxu0
    %vm132 = vcmask 392192
    %v134 = vsel %vm132, %v46, 0
    %v137 = vsel %vm132, %v47, 0
    %139 = vmatprep.subr.mxu0 0.0
    %140 = vmatpush1.xpose.msra.mxu0 0.0
    %141 = vmatprep.subr.mxu0 0.0
    %142 = vmatpush1.xpose.msra.mxu0 0.0
    %143 = vmatprep.subr.mxu0 0.0
    %144 = vmatpush1.xpose.msra.mxu0 0.0
    %145 = vmatprep.subr.mxu0 0.0
    %146 = vmatpush1.xpose.msra.mxu0 0.0
    %147 = vmatprep.subr.mxu0 0.0
    %148 = vmatpush1.xpose.msra.mxu0 0.0
    %149 = vmatprep.subr.mxu0 0.0
    %150 = vmatpush1.xpose.msra.mxu0 0.0
    %151 = vmatprep.subr.mxu0 0.0
    %152 = vmatpush1.xpose.msra.mxu0 0.0
    %153 = vmatprep.subr.mxu0 0.0
    %154 = vmatpush1.xpose.msra.mxu0 0.0
    %155 = vmatprep.subr.mxu0 0.0
    %156 = vmatpush1.xpose.msra.mxu0 0.0
    %157 = vmatprep.subr.mxu0 0.0
    %158 = vmatpush1.xpose.msra.mxu0 0.0
    %159 = vmatprep.subr.mxu0 0.0
    %160 = vmatpush1.xpose.msra.mxu0 0.0
    %161 = vmatprep.subr.mxu0 0.0
    %162 = vmatpush1.xpose.msra.mxu0 0.0
    %163 = vmatprep.subr.mxu0 0.0
    %164 = vmatpush1.xpose.msra.mxu0 0.0
    %165 = vmatprep.subr.mxu0 0.0
    %166 = vmatpush1.xpose.msra.mxu0 0.0
    %167 = vmatprep.subr.mxu0 0.0
    %168 = vmatpush1.xpose.msra.mxu0 0.0
    %169 = vmatprep.subr.mxu0 0.0
    %170 = vmatpush1.xpose.msra.mxu0 %v137
    %171 = vmatprep.subr.mxu0 0.0
    %172 = vmatpush2.xpose.msra.mxu0 0.0
    %173 = vmatprep.subr.mxu0 0.0
    %174 = vmatpush2.xpose.msra.mxu0 0.0
    %175 = vmatprep.subr.mxu0 0.0
    %176 = vmatpush2.xpose.msra.mxu0 0.0
    %177 = vmatprep.subr.mxu0 0.0
    %178 = vmatpush2.xpose.msra.mxu0 0.0
    %179 = vmatprep.subr.mxu0 0.0
    %180 = vmatpush2.xpose.msra.mxu0 0.0
    %181 = vmatprep.subr.mxu0 0.0
    %182 = vmatpush2.xpose.msra.mxu0 0.0
    %183 = vmatprep.subr.mxu0 0.0
    %184 = vmatpush2.xpose.msra.mxu0 0.0
    %185 = vmatprep.subr.mxu0 0.0
    %186 = vmatpush2.xpose.msra.mxu0 0.0
    %187 = vmatprep.subr.mxu0 0.0
    %188 = vmatpush2.xpose.msra.mxu0 0.0
    %189 = vmatprep.subr.mxu0 0.0
    %190 = vmatpush2.xpose.msra.mxu0 0.0
    %191 = vmatprep.subr.mxu0 0.0
    %192 = vmatpush2.xpose.msra.mxu0 0.0
    %193 = vmatprep.subr.mxu0 0.0
    %194 = vmatpush2.xpose.msra.mxu0 0.0
    %195 = vmatprep.subr.mxu0 0.0
    %196 = vmatpush2.xpose.msra.mxu0 0.0
    %197 = vmatprep.subr.mxu0 0.0
    %198 = vmatpush2.xpose.msra.mxu0 0.0
    %199 = vmatprep.subr.mxu0 0.0
    %200 = vmatpush2.xpose.msra.mxu0 0.0
    %201 = vmatprep.subr.mxu0 0.0
    %202 = vmatpush2.xpose.msra.mxu0 0.0
    %203 = vmatprep.mubr.f32.mxu0 0.0
    %204 = vmatmul.mubr.f32.gmra.mxu0 %v134
    %v205 = vpop.f32.mrf.mxu0
    %v206 = vadd.f32 %v129, %v205
    %v207 = vpop.f32.mrf.mxu0
    %208 = vdwg.mxu0
    %s209 = sld [smem:[#allocation2]]
    %v210 = vstv %s209
    %v211 = vadd.f32 %v206, %v210
    %v212 = vxor.u32 %v211, 2147483648
    %v213 = vmul.f32 %v212, 1.442695
    %v214 = vpow.pop %v213
    %v215 = vadd.f32 %v214, 1.0
    %v216 = vrcp.pop %v215
    %v217 = vmul.f32 1.0, %v216
    %vm218 = vcmask 57344
    %219 = vst.msk [vmem:[#allocation8] sm:$0x1] %vm218, %v217
    // Predicated region
    $region30: #{tpu_custom_call.1} parent=1 // pred_check
      _
    $region31: #{tpu_custom_call.1} parent=1 // pred_check_branch
      %221 = sbr.rel (0) target = $region33
    $region32: #{tpu_custom_call.1} parent=1 // pred_region
      %s223 = ssub.s32 16, 16
      %224 = vsyncadd [#allocation5], %s223
      %s226 = sshll.u32 [#allocation8], 4
      %s227 = int_to_ptr.vmem [resolvable:$true] %s226
      %229 = dma.vmem_to_hbm [thread:$0]  %s227, 16, %s5, [#allocation5]
    $region33: #{tpu_custom_call.1} parent=1 // pred_fallthru
      _
    // Predicated region
    $region34: #{tpu_custom_call.1} parent=1 // pred_check
      _
    $region35: #{tpu_custom_call.1} parent=1 // pred_check_branch
      %231 = sbr.rel (0) target = $region37
    $region36: #{tpu_custom_call.1} parent=1 // pred_region
      %232 = dma.done [#allocation5], 16
    $region37: #{tpu_custom_call.1} parent=1 // pred_fallthru
      _
    %233 = vsyncpa [#allocation4], 1
    %234 = vsyncpa [#allocation7], 1
    %235 = vsyncpa [#allocation5], 1

</llo_original>
